<compile_context>
chip_gen: v5e
topology: v5e:2x2
jax: 0.10.0
libtpu: 0.0.40
codegen_flags: <defaults>
</compile_context>

<pallas_src>
import functools

import jax
import jax.numpy as jnp
from jax.experimental import pallas as pl
from jax.experimental.pallas import tpu as pltpu


def _self_attn_prior_kernel(h_ref, w1_ref, b1_ref, wmv_ref, bmv_ref, out_ref):
    S, Bblk, D = h_ref.shape

    # (S, Bblk, D) -> (Bblk, S, D).  Lane dim (D) is untouched, so this is a
    # cheap in-VMEM sublane shuffle — far cheaper than the HBM transpose it
    # replaces in the wrapper.
    h = jnp.transpose(h_ref[...].astype(jnp.float32), (1, 0, 2))       # (B, S, D)

    # scores_b = h_b @ h_b^T, contracting on the lane dim of both operands
    # (no transposed VMEM copy).
    scores = jnp.einsum('bsd,btd->bst', h, h,
                        preferred_element_type=jnp.float32)            # (B, S, S)

    # Numerically stable row-softmax; divide replaced by reciprocal-multiply.
    m = jnp.max(scores, axis=-1, keepdims=True)
    p = jnp.exp(scores - m)
    denom = jnp.sum(p, axis=-1, keepdims=True)
    inv = pl.reciprocal(denom, approx=False)                           # (B, S, 1)

    # mean_s(attn @ h) == mean_s(attn) @ h ; fold 1/S into the normalizer so
    # `attn` and `c` are never materialized.
    avg_attn = jnp.sum(p * (inv * (1.0 / S)), axis=1)                  # (B, S_k)
    # Tiny weighted sum over the key axis: VPU broadcast-multiply + sublane
    # reduce beats an M=1 MXU matvec at S=8.
    c_mean = jnp.sum(avg_attn[:, :, None] * h, axis=1)                 # (B, D)
    h_mean = jnp.mean(h, axis=1)                                       # (B, D)

    # h_z = tanh([c_mean | h_mean] @ W1 + b1) without the lane-axis concat:
    # consume W1 as its two D-row halves (static, sublane-aligned ref slices).
    h_z = jnp.tanh(
        jnp.dot(c_mean, w1_ref[:D, :], preferred_element_type=jnp.float32)
        + jnp.dot(h_mean, w1_ref[D:, :], preferred_element_type=jnp.float32)
        + b1_ref[...])                                                 # (B, L)

    # Fused mu|log_var heads: one (B, L) @ (L, 2L) matmul, one lane-dense store.
    out = jnp.dot(h_z, wmv_ref[...], preferred_element_type=jnp.float32) \
        + bmv_ref[...]                                                 # (B, 2L)
    out_ref[...] = out.astype(out_ref.dtype)


@functools.partial(jax.jit, static_argnames=("batch_block",))
def self_attention_prior(encoded_src, params, *, batch_block=None):
    """encoded_src: (S, B, 2*hidden) (PyTorch seq-major layout, no wrapper
    transpose needed).  Returns (mu, log_var), each (B, latent)."""
    w1, b1, wmu, bmu, wvar, bvar = params
    S, B, D = encoded_src.shape
    L = w1.shape[1]
    assert w1.shape[0] == 2 * D  # 4 * hidden

    # Default: whole batch in one grid step (best on single-TC v5e/v6e at small
    # B).  On v7x with larger B, pass batch_block = B // 2 (must be a multiple
    # of 8, or equal to B) so the "parallel" grid axis shards across both TCs.
    if batch_block is None:
        batch_block = B
    assert B % batch_block == 0
    assert batch_block == B or batch_block % 8 == 0, (
        "sub-full batch blocks sit on the sublane axis and must be multiples of 8")
    nb = B // batch_block

    # One-time weight packing: fuse the mu/log_var heads into a single
    # lane-dense (L, 2L) matmul (in production this would be pre-packed).
    wmv = jnp.concatenate([wmu, wvar], axis=1)                         # (L, 2L)
    bmv = jnp.concatenate([bmu, bvar], axis=1)                         # (1, 2L)

    out = pl.pallas_call(
        _self_attn_prior_kernel,
        out_shape=jax.ShapeDtypeStruct((B, 2 * L), jnp.float32),
        grid_spec=pltpu.PrefetchScalarGridSpec(
            num_scalar_prefetch=0,
            grid=(nb,),
            in_specs=[
                # Pick the batch slice straight out of the middle axis of the
                # (S, B, D) array — no host-side transpose.
                pl.BlockSpec((S, batch_block, D), lambda i: (0, i, 0)),
                pl.BlockSpec((2 * D, L), lambda i: (0, 0)),   # W1 (in, out)
                pl.BlockSpec((1, L), lambda i: (0, 0)),       # b1
                pl.BlockSpec((L, 2 * L), lambda i: (0, 0)),   # [W_mu | W_var]
                pl.BlockSpec((1, 2 * L), lambda i: (0, 0)),   # [b_mu | b_var]
            ],
            out_specs=pl.BlockSpec((batch_block, 2 * L), lambda i: (i, 0)),
        ),
        compiler_params=pltpu.CompilerParams(dimension_semantics=("parallel",)),
    )(encoded_src, w1, b1, wmv, bmv)

    return out[:, :L], out[:, L:]


def _reference(encoded_src, params):
    """Pure-JAX reference mirroring the PyTorch forward (eval mode)."""
    w1, b1, wmu, bmu, wvar, bvar = params
    h_src = jnp.transpose(encoded_src, (1, 0, 2)).astype(jnp.float32)  # (B, S, D)
    attn = jnp.einsum('bsd,btd->bst', h_src, h_src)
    attn = jax.nn.softmax(attn, axis=2)
    c_src = jnp.einsum('bst,btd->bsd', attn, h_src)
    h = jnp.concatenate([c_src.mean(axis=1), h_src.mean(axis=1)], axis=1)
    h_z = jnp.tanh(h @ w1 + b1[0])
    mu = h_z @ wmu + bmu[0]
    lv = h_z @ wvar + bvar[0]
    return mu, lv


def _init_params(key, hidden_size, latent_size):
    # Deterministic synthetic weights (PyTorch Linear stored transposed: (in, out)).
    k1, k2, k3, k4, k5, k6 = jax.random.split(key, 6)
    in1 = 4 * hidden_size
    w1 = jax.random.normal(k1, (in1, latent_size), jnp.float32) * (1.0 / jnp.sqrt(in1))
    b1 = jax.random.normal(k2, (1, latent_size), jnp.float32) * 0.01
    wmu = jax.random.normal(k3, (latent_size, latent_size), jnp.float32) * (1.0 / jnp.sqrt(latent_size))
    bmu = jax.random.normal(k4, (1, latent_size), jnp.float32) * 0.01
    wvar = jax.random.normal(k5, (latent_size, latent_size), jnp.float32) * (1.0 / jnp.sqrt(latent_size))
    bvar = jax.random.normal(k6, (1, latent_size), jnp.float32) * 0.01
    return (w1, b1, wmu, bmu, wvar, bvar)


if __name__ == "__main__":
    hidden_size = 32          # -> D = 2*hidden = 64, linear input = 4*hidden = 128
    latent_size = 32
    seq_len = 8
    batch = 2

    key = jax.random.PRNGKey(0)
    k_params, k_src, k_enc = jax.random.split(key, 3)
    params = _init_params(k_params, hidden_size, latent_size)

    # src is unused by the forward pass (kept for signature parity with PyTorch).
    src = jax.random.normal(k_src, (seq_len, batch), jnp.float32)
    encoded_src = jax.random.normal(k_enc, (seq_len, batch, 2 * hidden_size), jnp.float32)

    # TODO(synk): dropout layers are identity in eval mode; training-mode dropout
    # (stateful RNG masks) is intentionally not implemented.
    mu, log_var = self_attention_prior(encoded_src, params)
    jax.block_until_ready((mu, log_var))

    mu_ref, lv_ref = _reference(encoded_src, params)
    assert mu.shape == (batch, latent_size) and log_var.shape == (batch, latent_size)
    assert jnp.allclose(mu, mu_ref, rtol=1e-4, atol=1e-4)
    assert jnp.allclose(log_var, lv_ref, rtol=1e-4, atol=1e-4)

    print("KERNEL_OK")
</pallas_src>

<mosaic_0001>
module attributes {stable_mosaic.version = 11 : i64} {
  func.func @_self_attn_prior_kernel(%arg0: i32, %arg1: memref<8x2x64xf32, #tpu.memory_space<vmem>>, %arg2: memref<128x32xf32, #tpu.memory_space<vmem>>, %arg3: memref<1x32xf32, #tpu.memory_space<vmem>>, %arg4: memref<32x64xf32, #tpu.memory_space<vmem>>, %arg5: memref<1x64xf32, #tpu.memory_space<vmem>>, %arg6: memref<2x64xf32, #tpu.memory_space<vmem>>) attributes {dimension_semantics = [#tpu.dimension_semantics<parallel>], iteration_bounds = array<i64: 1>, scalar_prefetch = 0 : i64, scratch_operands = 0 : i64, tpu.core_type = #tpu.core_type<tc>, window_params = [{transform_indices = @transform_0, window_bounds = array<i64: 8, 2, 64>}, {pipeline_mode = #tpu.pipeline_mode<synchronous>, transform_indices = @transform_1, window_bounds = array<i64: 128, 32>}, {pipeline_mode = #tpu.pipeline_mode<synchronous>, transform_indices = @transform_2, window_bounds = array<i64: 1, 32>}, {pipeline_mode = #tpu.pipeline_mode<synchronous>, transform_indices = @transform_3, window_bounds = array<i64: 32, 64>}, {pipeline_mode = #tpu.pipeline_mode<synchronous>, transform_indices = @transform_4, window_bounds = array<i64: 1, 64>}, {transform_indices = @transform_5, window_bounds = array<i64: 2, 64>}]} {
    %c0 = arith.constant 0 : index
    %c0_0 = arith.constant 0 : index
    %c0_1 = arith.constant 0 : index
    %0 = vector.load %arg1[%c0, %c0_0, %c0_1] : memref<8x2x64xf32, #tpu.memory_space<vmem>>, vector<8x2x64xf32>
    %1 = tpu.transpose %0, [1, 0, 2] : vector<8x2x64xf32> -> vector<2x8x64xf32>
    "tpu.trace_start"() <{level = 10 : i32, message = "bsd,btd->bst"}> : () -> ()
    %cst = arith.constant dense<0.000000e+00> : vector<2x8x8xf32>
    %2 = tpu.matmul %1, %1, %cst {dimension_numbers = #tpu.dot_dimension_numbers<[2], [2], [1], [1], [0, 0, 0, 1, 1, 1], [0], [0]>} : vector<2x8x64xf32>, vector<2x8x64xf32>, vector<2x8x8xf32> -> vector<2x8x8xf32>
    "tpu.trace_stop"() : () -> ()
    %cst_2 = arith.constant dense<0xFF800000> : vector<2x8xf32>
    %3 = vector.multi_reduction <maximumf>, %2, %cst_2 [2] : vector<2x8x8xf32> to vector<2x8xf32>
    %4 = vector.shape_cast %3 : vector<2x8xf32> to vector<2x8x1xf32>
    %5 = vector.broadcast %4 : vector<2x8x1xf32> to vector<2x8x8xf32>
    %6 = arith.subf %2, %5 : vector<2x8x8xf32>
    %7 = math.exp %6 : vector<2x8x8xf32>
    %cst_3 = arith.constant dense<0.000000e+00> : vector<2x8xf32>
    %8 = vector.multi_reduction <add>, %7, %cst_3 [2] : vector<2x8x8xf32> to vector<2x8xf32>
    %9 = vector.shape_cast %8 : vector<2x8xf32> to vector<2x8x1xf32>
    %10 = tpu.reciprocal %9 : vector<2x8x1xf32> -> vector<2x8x1xf32>
    %cst_4 = arith.constant 1.250000e-01 : f32
    %11 = vector.broadcast %cst_4 : f32 to vector<2x8x1xf32>
    %12 = arith.mulf %10, %11 : vector<2x8x1xf32>
    %13 = vector.broadcast %12 : vector<2x8x1xf32> to vector<2x8x8xf32>
    %14 = arith.mulf %7, %13 : vector<2x8x8xf32>
    %cst_5 = arith.constant dense<0.000000e+00> : vector<2x8xf32>
    %15 = vector.multi_reduction <add>, %14, %cst_5 [1] : vector<2x8x8xf32> to vector<2x8xf32>
    %16 = vector.shape_cast %15 : vector<2x8xf32> to vector<2x8x1xf32>
    %17 = vector.broadcast %16 : vector<2x8x1xf32> to vector<2x8x64xf32>
    %18 = arith.mulf %17, %1 : vector<2x8x64xf32>
    %cst_6 = arith.constant dense<0.000000e+00> : vector<2x64xf32>
    %19 = vector.multi_reduction <add>, %18, %cst_6 [1] : vector<2x8x64xf32> to vector<2x64xf32>
    %cst_7 = arith.constant dense<0.000000e+00> : vector<2x64xf32>
    %20 = vector.multi_reduction <add>, %1, %cst_7 [1] : vector<2x8x64xf32> to vector<2x64xf32>
    %cst_8 = arith.constant 8.000000e+00 : f32
    %21 = vector.broadcast %cst_8 : f32 to vector<2x64xf32>
    %22 = arith.divf %20, %21 : vector<2x64xf32>
    %c0_9 = arith.constant 0 : index
    %c0_10 = arith.constant 0 : index
    %23 = vector.load %arg2[%c0_9, %c0_10] : memref<128x32xf32, #tpu.memory_space<vmem>>, vector<64x32xf32>
    %cst_11 = arith.constant dense<0.000000e+00> : vector<2x32xf32>
    %24 = tpu.matmul %19, %23, %cst_11 {dimension_numbers = #tpu.dot_dimension_numbers<[1], [0], [0], [1], [0, 0, 1, 1], [], []>} : vector<2x64xf32>, vector<64x32xf32>, vector<2x32xf32> -> vector<2x32xf32>
    %c64 = arith.constant 64 : index
    %c0_12 = arith.constant 0 : index
    %25 = vector.load %arg2[%c64, %c0_12] : memref<128x32xf32, #tpu.memory_space<vmem>>, vector<64x32xf32>
    %cst_13 = arith.constant dense<0.000000e+00> : vector<2x32xf32>
    %26 = tpu.matmul %22, %25, %cst_13 {dimension_numbers = #tpu.dot_dimension_numbers<[1], [0], [0], [1], [0, 0, 1, 1], [], []>} : vector<2x64xf32>, vector<64x32xf32>, vector<2x32xf32> -> vector<2x32xf32>
    %27 = arith.addf %24, %26 : vector<2x32xf32>
    %c0_14 = arith.constant 0 : index
    %c0_15 = arith.constant 0 : index
    %28 = vector.load %arg3[%c0_14, %c0_15] : memref<1x32xf32, #tpu.memory_space<vmem>>, vector<1x32xf32>
    %29 = vector.broadcast %28 : vector<1x32xf32> to vector<2x32xf32>
    %30 = arith.addf %27, %29 : vector<2x32xf32>
    %31 = math.tanh %30 : vector<2x32xf32>
    %c0_16 = arith.constant 0 : index
    %c0_17 = arith.constant 0 : index
    %32 = vector.load %arg4[%c0_16, %c0_17] : memref<32x64xf32, #tpu.memory_space<vmem>>, vector<32x64xf32>
    %cst_18 = arith.constant dense<0.000000e+00> : vector<2x64xf32>
    %33 = tpu.matmul %31, %32, %cst_18 {dimension_numbers = #tpu.dot_dimension_numbers<[1], [0], [0], [1], [0, 0, 1, 1], [], []>} : vector<2x32xf32>, vector<32x64xf32>, vector<2x64xf32> -> vector<2x64xf32>
    %c0_19 = arith.constant 0 : index
    %c0_20 = arith.constant 0 : index
    %34 = vector.load %arg5[%c0_19, %c0_20] : memref<1x64xf32, #tpu.memory_space<vmem>>, vector<1x64xf32>
    %35 = vector.broadcast %34 : vector<1x64xf32> to vector<2x64xf32>
    %36 = arith.addf %33, %35 : vector<2x64xf32>
    %c0_21 = arith.constant 0 : index
    %c0_22 = arith.constant 0 : index
    %37 = vector.load %arg6[%c0_21, %c0_22] : memref<2x64xf32, #tpu.memory_space<vmem>>, vector<2x64xf32>
    tpu.vector_store %arg6[%c0_21, %c0_22], %36 {strides = array<i32>} : memref<2x64xf32, #tpu.memory_space<vmem>>, vector<2x64xf32>,
    return
  }
  func.func @transform_0(%arg0: i32) -> (i32, i32, i32) {
    %c0_i32 = arith.constant 0 : i32
    %c0_i32_0 = arith.constant 0 : i32
    %c0_i32_1 = arith.constant 0 : i32
    return %c0_i32, %arg0, %c0_i32_0 : i32, i32, i32
  }
  func.func @transform_1(%arg0: i32) -> (i32, i32) {
    %c0_i32 = arith.constant 0 : i32
    %c0_i32_0 = arith.constant 0 : i32
    %c0_i32_1 = arith.constant 0 : i32
    return %c0_i32, %c0_i32_0 : i32, i32
  }
  func.func @transform_2(%arg0: i32) -> (i32, i32) {
    %c0_i32 = arith.constant 0 : i32
    %c0_i32_0 = arith.constant 0 : i32
    %c0_i32_1 = arith.constant 0 : i32
    return %c0_i32, %c0_i32_0 : i32, i32
  }
  func.func @transform_3(%arg0: i32) -> (i32, i32) {
    %c0_i32 = arith.constant 0 : i32
    %c0_i32_0 = arith.constant 0 : i32
    %c0_i32_1 = arith.constant 0 : i32
    return %c0_i32, %c0_i32_0 : i32, i32
  }
  func.func @transform_4(%arg0: i32) -> (i32, i32) {
    %c0_i32 = arith.constant 0 : i32
    %c0_i32_0 = arith.constant 0 : i32
    %c0_i32_1 = arith.constant 0 : i32
    return %c0_i32, %c0_i32_0 : i32, i32
  }
  func.func @transform_5(%arg0: i32) -> (i32, i32) {
    %c0_i32 = arith.constant 0 : i32
    %c0_i32_0 = arith.constant 0 : i32
    return %arg0, %c0_i32 : i32, i32
  }
}

</mosaic_0001>

<llo_original>
// kernel: self_attention_prior.1
$region0: #{self_attention_prior.1}
  #allocation0 [shape = 'u32[]', space=smem, size = 0x4, offset = 0x4, fixed_abs, tag = 'smem constant byte address 0x4 - core index']
  #allocation1 [shape = 'u32[72,128]{1,0:T(1,128)}', space=vmem, size = 0x9000, scoped, tag = 'internal scratch']
  %s0 = inlined_call_operand.vmem [shape: f32[8,2,64], index: 0, kind: input, shape index: {}]
  %s1 = inlined_call_operand.vmem [shape: f32[128,32], index: 1, kind: input, shape index: {}]
  %s2 = inlined_call_operand.vmem [shape: f32[1,32], index: 2, kind: input, shape index: {}]
  %s3 = inlined_call_operand.vmem [shape: f32[32,64], index: 3, kind: input, shape index: {}]
  %s4 = inlined_call_operand.vmem [shape: f32[1,64], index: 4, kind: input, shape index: {}]
  %s5 = inlined_call_operand.vmem [shape: f32[2,64], index: 5, kind: output, shape index: {}]
  %s6 = sld [smem:[#allocation0]]
  $region30: #{self_attention_prior.1} parent=0
    _
  %s8 = ssub.s32 1, %s6
  %s9 = scalar_select 0, %s8, %s6
  // Predicated region
  $region2: #{self_attention_prior.1} parent=0 // pred_check
    _
  $region3: #{self_attention_prior.1} parent=0 // pred_check_branch
    %11 = sbr.rel (0) target = $region5
  $region4: #{self_attention_prior.1} parent=0 // pred_region
    _
  $region5: #{self_attention_prior.1} parent=0 // pred_fallthru
    _
  // Predicated region
  $region6: #{self_attention_prior.1} parent=0 // pred_check
    _
  $region7: #{self_attention_prior.1} parent=0 // pred_check_branch
    %13 = sbr.rel (0) target = $region9
  $region8: #{self_attention_prior.1} parent=0 // pred_region
    _
  $region9: #{self_attention_prior.1} parent=0 // pred_fallthru
    _
  // Predicated region
  $region10: #{self_attention_prior.1} parent=0 // pred_check
    _
  $region11: #{self_attention_prior.1} parent=0 // pred_check_branch
    %15 = sbr.rel (0) target = $region13
  $region12: #{self_attention_prior.1} parent=0 // pred_region
    _
  $region13: #{self_attention_prior.1} parent=0 // pred_fallthru
    _
  // Predicated region
  $region14: #{self_attention_prior.1} parent=0 // pred_check
    _
  $region15: #{self_attention_prior.1} parent=0 // pred_check_branch
    %17 = sbr.rel (0) target = $region17
  $region16: #{self_attention_prior.1} parent=0 // pred_region
    _
  $region17: #{self_attention_prior.1} parent=0 // pred_fallthru
    _
  // Predicated region
  $region18: #{self_attention_prior.1} parent=0 // pred_check
    _
  $region19: #{self_attention_prior.1} parent=0 // pred_check_branch
    %19 = sbr.rel (0) target = $region21
  $region20: #{self_attention_prior.1} parent=0 // pred_region
    _
  $region21: #{self_attention_prior.1} parent=0 // pred_fallthru
    _
  %v20 = vld [vmem:[%s0] sm:$0x3]
  %v21 = vld [vmem:[%s0 + $0x2] sm:$0x3]
  %v22 = vld [vmem:[%s0 + $0x4] sm:$0x3]
  %v23 = vld [vmem:[%s0 + $0x6] sm:$0x3]
  %v24 = vld [vmem:[%s0 + $0x8] sm:$0x3]
  %v25 = vld [vmem:[%s0 + $0xa] sm:$0x3]
  %v26 = vld [vmem:[%s0 + $0xc] sm:$0x3]
  %v27 = vld [vmem:[%s0 + $0xe] sm:$0x3]
  %v28 = vrot.slane %v22, 4
  %vm29 = vcmask 1047556
  %v30 = vsel %vm29, %v28, %v20
  %v32 = vunpack.c.l.s4 1983009808
  %v33 = vunpack.c.0.s8 %v32
  %v34 = vperm.slane %v30, %v33
  %v35 = vrot.slane %v23, 4
  %v36 = vsel %vm29, %v35, %v21
  %v38 = vunpack.c.l.s4 1983009808
  %v39 = vunpack.c.0.s8 %v38
  %v40 = vperm.slane %v36, %v39
  %v41 = vrot.slane %v26, 4
  %v42 = vsel %vm29, %v41, %v24
  %v44 = vunpack.c.l.s4 1983009808
  %v45 = vunpack.c.0.s8 %v44
  %v46 = vperm.slane %v42, %v45
  %v47 = vrot.slane %v27, 4
  %v48 = vsel %vm29, %v47, %v25
  %v50 = vunpack.c.l.s4 1983009808
  %v51 = vunpack.c.0.s8 %v50
  %v52 = vperm.slane %v48, %v51
  %v53 = vrot.slane %v40, 4
  %v54 = vsel %vm29, %v53, %v34
  %v56 = vunpack.c.l.s4 1934713408
  %v57 = vunpack.c.0.s8 %v56
  %v58 = vperm.slane %v54, %v57
  %v59 = vrot.slane %v52, 4
  %v60 = vsel %vm29, %v59, %v46
  %v62 = vunpack.c.l.s4 1934713408
  %v63 = vunpack.c.0.s8 %v62
  %v64 = vperm.slane %v60, %v63
  %v65 = vrot.slane %v64, 4
  %v66 = vsel %vm29, %v65, %v58
  %v67 = vrot.slane %v58, 4
  %v68 = vsel %vm29, %v64, %v67
  %vm69 = vcmask 523264
  %v71 = vsel %vm69, %v66, 0
  %73 = vmatpush.xpose.msra.mxu0 0.0
  %74 = vmatpush.xpose.msra.mxu0 0.0
  %75 = vmatpush.xpose.msra.mxu0 0.0
  %76 = vmatpush.xpose.msra.mxu0 0.0
  %77 = vmatpush.xpose.msra.mxu0 0.0
  %78 = vmatpush.xpose.msra.mxu0 0.0
  %79 = vmatpush.xpose.msra.mxu0 0.0
  %80 = vmatpush.xpose.msra.mxu0 0.0
  %81 = vmatpush.xpose.msra.mxu0 0.0
  %82 = vmatpush.xpose.msra.mxu0 0.0
  %83 = vmatpush.xpose.msra.mxu0 0.0
  %84 = vmatpush.xpose.msra.mxu0 0.0
  %85 = vmatpush.xpose.msra.mxu0 0.0
  %86 = vmatpush.xpose.msra.mxu0 0.0
  %87 = vmatpush.xpose.msra.mxu0 0.0
  %88 = vmatpush.xpose.msra.mxu0 %v71
  %89 = vmatmul.f32.gmra.mxu0 %v71
  %v90 = vpop.f32.mrf.mxu0
  %v91 = vadd.f32 0.0, %v90
  %92 = vdwg.mxu0
  %v94 = vsel %vm69, %v68, 0
  %96 = vmatpush.xpose.msra.mxu0 0.0
  %97 = vmatpush.xpose.msra.mxu0 0.0
  %98 = vmatpush.xpose.msra.mxu0 0.0
  %99 = vmatpush.xpose.msra.mxu0 0.0
  %100 = vmatpush.xpose.msra.mxu0 0.0
  %101 = vmatpush.xpose.msra.mxu0 0.0
  %102 = vmatpush.xpose.msra.mxu0 0.0
  %103 = vmatpush.xpose.msra.mxu0 0.0
  %104 = vmatpush.xpose.msra.mxu0 0.0
  %105 = vmatpush.xpose.msra.mxu0 0.0
  %106 = vmatpush.xpose.msra.mxu0 0.0
  %107 = vmatpush.xpose.msra.mxu0 0.0
  %108 = vmatpush.xpose.msra.mxu0 0.0
  %109 = vmatpush.xpose.msra.mxu0 0.0
  %110 = vmatpush.xpose.msra.mxu0 0.0
  %111 = vmatpush.xpose.msra.mxu0 %v94
  %112 = vmatmul.f32.gmra.mxu0 %v94
  %v113 = vpop.f32.mrf.mxu0
  %v114 = vadd.f32 0.0, %v113
  %115 = vdwg.mxu0
  %vm116 = vcmask 64512
  %v117 = vsel %vm116, %v91, -inf
  %118 = vmax.xlane.f32.xlu0 %v117
  %v119 = vpop.xlane.xlu0 %118
  %v120 = vsel %vm116, %v114, -inf
  %121 = vmax.xlane.f32.xlu0 %v120
  %v122 = vpop.xlane.xlu0 %121
  %v123 = vsub.f32 %v91, %v119
  %v124 = vsub.f32 %v114, %v122
  %v125 = vmul.f32 %v123, 1.442695
  %v126 = vpow.pop %v125
  %v127 = vmul.f32 %v124, 1.442695
  %v128 = vpow.pop %v127
  %v129 = vsel %vm116, %v126, 0.0
  %130 = vadd.xlane.f32.xlu0 %v129
  %v131 = vpop.xlane.xlu0 %130
  %v132 = vsel %vm116, %v128, 0.0
  %133 = vadd.xlane.f32.xlu0 %v132
  %v134 = vpop.xlane.xlu0 %133
  %v135 = vrcp.pop %v131
  %v136 = vmul.f32 %v131, %v135
  %v137 = vsub.f32 1.0, %v136
  %v138 = vmul.f32 %v135, %v137
  %v139 = vadd.f32 %v135, %v138
  %vm140 = vweird.f32 %v131
  %vm141 = vweird.f32 %v135
  %vm142 = vmor %vm140, %vm141
  %v143 = vsel %vm142, %v135, %v139
  %v144 = vand.u32 2147483647, %v131
  %vm145 = vcmp.eq.f32.partialorder %v144, 8.507059e+37
  %v146 = vand.u32 %v131, 2147483648
  %v147 = vor.u32 1.1754944e-38, %v146
  %v148 = vsel %vm145, %v147, %v143
  %v149 = vrcp.pop %v134
  %v150 = vmul.f32 %v134, %v149
  %v151 = vsub.f32 1.0, %v150
  %v152 = vmul.f32 %v149, %v151
  %v153 = vadd.f32 %v149, %v152
  %vm154 = vweird.f32 %v134
  %vm155 = vweird.f32 %v149
  %vm156 = vmor %vm154, %vm155
  %v157 = vsel %vm156, %v149, %v153
  %v158 = vand.u32 2147483647, %v134
  %vm159 = vcmp.eq.f32.partialorder %v158, 8.507059e+37
  %v160 = vand.u32 %v134, 2147483648
  %v161 = vor.u32 1.1754944e-38, %v160
  %v162 = vsel %vm159, %v161, %v157
  %v163 = vmul.f32 %v148, 0.125
  %v164 = vmul.f32 %v162, 0.125
  %v165 = vmul.f32 %v126, %v163
  %v166 = vmul.f32 %v128, %v164
  %v167 = vsel %vm116, %v165, 0.0
  %v168 = vrot.slane %v167, 4
  %v169 = vadd.f32 %v167, %v168
  %v170 = vrot.slane %v169, 2
  %v171 = vadd.f32 %v169, %v170
  %v172 = vrot.slane %v171, 1
  %v173 = vadd.f32 %v171, %v172
  %v174 = vsel %vm116, %v166, 0.0
  %v175 = vrot.slane %v174, 4
  %v176 = vadd.f32 %v174, %v175
  %v177 = vrot.slane %v176, 2
  %v178 = vadd.f32 %v176, %v177
  %v179 = vrot.slane %v178, 1
  %v180 = vadd.f32 %v178, %v179
  %v181 = vlaneseq
  %v182 = vshrl.u32 %v181, 7
  %184 = vset.pattern.permute.xlu0 %v182
  %185 = vperm.xlu0 %184, %v173
  %v186 = vpop.permute.xlu0 %185
  %v187 = vlaneseq
  %v188 = vshrl.u32 %v187, 7
  %190 = vset.pattern.permute.xlu0 %v188
  %191 = vperm.xlu0 %190, %v180
  %v192 = vpop.permute.xlu0 %191
  %v193 = vmul.f32 %v186, %v66
  %v194 = vmul.f32 %v192, %v68
  %v195 = vsel %vm69, %v193, 0.0
  %v196 = vrot.slane %v195, 4
  %v197 = vadd.f32 %v195, %v196
  %v198 = vrot.slane %v197, 2
  %v199 = vadd.f32 %v197, %v198
  %v200 = vrot.slane %v199, 1
  %v201 = vadd.f32 %v199, %v200
  %v202 = vsel %vm69, %v194, 0.0
  %v203 = vrot.slane %v202, 4
  %v204 = vadd.f32 %v202, %v203
  %v205 = vrot.slane %v204, 2
  %v206 = vadd.f32 %v204, %v205
  %v207 = vrot.slane %v206, 1
  %v208 = vadd.f32 %v206, %v207
  %v209 = vsel %vm69, %v66, 0.0
  %v210 = vrot.slane %v209, 4
  %v211 = vadd.f32 %v209, %v210
  %v212 = vrot.slane %v211, 2
  %v213 = vadd.f32 %v211, %v212
  %v214 = vrot.slane %v213, 1
  %v215 = vadd.f32 %v213, %v214
  %v216 = vsel %vm69, %v68, 0.0
  %v217 = vrot.slane %v216, 4
  %v218 = vadd.f32 %v216, %v217
  %v219 = vrot.slane %v218, 2
  %v220 = vadd.f32 %v218, %v219
  %v221 = vrot.slane %v220, 1
  %v222 = vadd.f32 %v220, %v221
  %v223 = vrcp.pop 8.0
  %v224 = vmul.f32 8.0, %v223
  %v225 = vsub.f32 1.0, %v224
  %v226 = vmul.f32 %v223, %v225
  %v227 = vadd.f32 %v223, %v226
  %vm228 = vweird.f32 %v223
  %v229 = vsel %vm228, %v223, %v227
  %v230 = vmul.f32 %v215, %v229
  %v231 = vmul.f32 %v222, %v229
  %v232 = vld [vmem:[%s1] sm:$0xff]
  %v233 = vld [vmem:[%s1 + $0x8] sm:$0xff]
  %v234 = vld [vmem:[%s1 + $0x10] sm:$0xff]
  %v235 = vld [vmem:[%s1 + $0x18] sm:$0xff]
  %v236 = vld [vmem:[%s1 + $0x20] sm:$0xff]
  %v237 = vld [vmem:[%s1 + $0x28] sm:$0xff]
  %v238 = vld [vmem:[%s1 + $0x30] sm:$0xff]
  %v239 = vld [vmem:[%s1 + $0x38] sm:$0xff]
  %v240 = vld [vmem:[%s1 + $0x40] sm:$0xff]
  %v241 = vld [vmem:[%s1 + $0x48] sm:$0xff]
  %v242 = vld [vmem:[%s1 + $0x50] sm:$0xff]
  %v243 = vld [vmem:[%s1 + $0x58] sm:$0xff]
  %v244 = vld [vmem:[%s1 + $0x60] sm:$0xff]
  %v245 = vld [vmem:[%s1 + $0x68] sm:$0xff]
  %v246 = vld [vmem:[%s1 + $0x70] sm:$0xff]
  %v247 = vld [vmem:[%s1 + $0x78] sm:$0xff]
  %vm250 = vcmask 1041409
  %v251 = vsel %vm250, %v231, %v230
  %v252 = vsel %vm69, %v251, 0
  %254 = vmatpush.msra.mxu0 0.0
  %255 = vmatpush.msra.mxu0 0.0
  %256 = vmatpush.msra.mxu0 0.0
  %257 = vmatpush.msra.mxu0 0.0
  %258 = vmatpush.msra.mxu0 0.0
  %259 = vmatpush.msra.mxu0 0.0
  %260 = vmatpush.msra.mxu0 0.0
  %261 = vmatpush.msra.mxu0 0.0
  %262 = vmatpush.msra.mxu0 %v247
  %263 = vmatpush.msra.mxu0 %v246
  %264 = vmatpush.msra.mxu0 %v245
  %265 = vmatpush.msra.mxu0 %v244
  %266 = vmatpush.msra.mxu0 %v243
  %267 = vmatpush.msra.mxu0 %v242
  %268 = vmatpush.msra.mxu0 %v241
  %269 = vmatpush.msra.mxu0 %v240
  %270 = vmatmul.f32.gmra.mxu0 %v252
  %v271 = vpop.f32.mrf.mxu0
  %v272 = vadd.f32 0.0, %v271
  %273 = vdwg.mxu0
  %v276 = vsel %vm250, %v208, %v201
  %v277 = vsel %vm69, %v276, 0
  %279 = vmatpush.msra.mxu0 0.0
  %280 = vmatpush.msra.mxu0 0.0
  %281 = vmatpush.msra.mxu0 0.0
  %282 = vmatpush.msra.mxu0 0.0
  %283 = vmatpush.msra.mxu0 0.0
  %284 = vmatpush.msra.mxu0 0.0
  %285 = vmatpush.msra.mxu0 0.0
  %286 = vmatpush.msra.mxu0 0.0
  %287 = vmatpush.msra.mxu0 %v239
  %288 = vmatpush.msra.mxu0 %v238
  %289 = vmatpush.msra.mxu0 %v237
  %290 = vmatpush.msra.mxu0 %v236
  %291 = vmatpush.msra.mxu0 %v235
  %292 = vmatpush.msra.mxu0 %v234
  %293 = vmatpush.msra.mxu0 %v233
  %294 = vmatpush.msra.mxu0 %v232
  %295 = vmatmul.f32.gmra.mxu0 %v277
  %v296 = vpop.f32.mrf.mxu0
  %v297 = vadd.f32 %v272, %v296
  %298 = vdwg.mxu0
  %v299 = vld [vmem:[%s2] sm:$0x1]
  %v301 = vperm.slane %v299, 0
  %v303 = vadd.f32 %v297, %v301
  %v304 = vtanh.pop %v303
  %v305 = vld [vmem:[%s3] sm:$0xff]
  %v306 = vld [vmem:[%s3 + $0x8] sm:$0xff]
  %v307 = vld [vmem:[%s3 + $0x10] sm:$0xff]
  %v308 = vld [vmem:[%s3 + $0x18] sm:$0xff]
  %v309 = vld [vmem:[%s4] sm:$0x1]
  %v311 = vperm.slane %v309, 0
  %vm313 = vcmask 261120
  %v315 = vsel %vm313, %v304, 0
  %317 = vmatpush.msra.mxu0 0.0
  %318 = vmatpush.msra.mxu0 0.0
  %319 = vmatpush.msra.mxu0 0.0
  %320 = vmatpush.msra.mxu0 0.0
  %321 = vmatpush.msra.mxu0 0.0
  %322 = vmatpush.msra.mxu0 0.0
  %323 = vmatpush.msra.mxu0 0.0
  %324 = vmatpush.msra.mxu0 0.0
  %325 = vmatpush.msra.mxu0 0.0
  %326 = vmatpush.msra.mxu0 0.0
  %327 = vmatpush.msra.mxu0 0.0
  %328 = vmatpush.msra.mxu0 0.0
  %329 = vmatpush.msra.mxu0 %v308
  %330 = vmatpush.msra.mxu0 %v307
  %331 = vmatpush.msra.mxu0 %v306
  %332 = vmatpush.msra.mxu0 %v305
  %333 = vmatmul.f32.gmra.mxu0 %v315
  %v334 = vpop.f32.mrf.mxu0
  %v335 = vadd.f32 %v311, %v334
  %336 = vdwg.mxu0
  %vm337 = vcmask 517120
  %338 = vst.msk [vmem:[%s5] sm:$0x3] %vm337, %v335
  // Predicated region
  $region22: #{self_attention_prior.1} parent=0 // pred_check
    _
  $region23: #{self_attention_prior.1} parent=0 // pred_check_branch
    %340 = sbr.rel (0) target = $region25
  $region24: #{self_attention_prior.1} parent=0 // pred_region
    _
  $region25: #{self_attention_prior.1} parent=0 // pred_fallthru
    _
  // Predicated region
  $region26: #{self_attention_prior.1} parent=0 // pred_check
    _
  $region27: #{self_attention_prior.1} parent=0 // pred_check_branch
    %342 = sbr.rel (0) target = $region29
  $region28: #{self_attention_prior.1} parent=0 // pred_region
    _
  $region29: #{self_attention_prior.1} parent=0 // pred_fallthru
    _

</llo_original>
